<compile_context>
chip_gen: v5e
topology: v5e:2x2
jax: 0.10.0
libtpu: 0.0.40
codegen_flags: <defaults>
</compile_context>

<pallas_src>
import functools

import jax
import jax.numpy as jnp
from jax import lax
from jax.experimental import pallas as pl
from jax.experimental.pallas import tpu as pltpu


def _round_up(x, m):
    return ((x + m - 1) // m) * m


def _bayar_conv_kernel(x_ref, w_ref, o_ref, p_ref, *,
                       cin, k, wp, lw_o, b_tile, ckk, ckk_pad):
    """im2col GEMM for b_tile batch elements.

    x_ref: (b_tile, cin, lp)       flattened + tail-padded images, VMEM
    w_ref: (cout_pad, ckk_pad)     zero-padded weight matrix, VMEM
    o_ref: (cout_pad, b_tile*lw_o) lane-dense "wide" output slab, VMEM
    p_ref: (ckk_pad, b_tile*lw_o)  VMEM scratch: im2col patch matrix
    """
    # One-time zeroing of the contraction-padding rows.  p_ref is scratch and
    # persists across grid iterations; rows [ckk, ckk_pad) are NEVER rewritten
    # by the tap loop below, so zeroing them only on the first grid step is
    # safe (do not reuse p_ref for anything else without revisiting this).
    if ckk_pad > ckk:
        @pl.when(pl.program_id(0) == 0)
        def _():
            p_ref[ckk:ckk_pad, :] = jnp.zeros(
                (ckk_pad - ckk, p_ref.shape[1]), p_ref.dtype)

    # Group taps so each patch write covers a full 8-sublane group when cin
    # divides 8 (cin=4 -> 12 paired 8-row writes + 1 remainder, all at
    # 8-aligned row offsets -> unmasked vector stores).
    group = 8 // cin if (cin < 8 and 8 % cin == 0) else 1
    n_taps = k * k

    # TODO(synk): if cin or k grows, convert this fully-unrolled tap loop into
    # lax.fori_loop(..., unroll=True) with pl.ds row offsets to bound live ranges.
    for b in range(b_tile):
        xf = x_ref[b]                       # (cin, lp) -- whole (tiny) image
        col = b * lw_o                      # 128-aligned column offset
        t = 0
        while t < n_taps:
            g = min(group, n_taps - t)
            slabs = []
            for dt in range(g):
                ky, kx = divmod(t + dt, k)
                s = ky * wp + kx            # lane shift for this tap
                slabs.append(xf[:, s:s + lw_o])
            blk = slabs[0] if g == 1 else jnp.concatenate(slabs, axis=0)
            r = t * cin                     # 8-aligned for full groups
            p_ref[r:r + g * cin, col:col + lw_o] = blk.astype(p_ref.dtype)
            t += g

    # One MXU matmul per grid step:
    # (cout_pad, ckk_pad) @ (ckk_pad, b_tile*lw_o) -> (cout_pad, b_tile*lw_o).
    out = jnp.dot(w_ref[...], p_ref[...], preferred_element_type=jnp.float32)
    o_ref[...] = out.astype(o_ref.dtype)


def bayar_constraint(kernel_param, minus1, out_channels, in_channels, kernel_size):
    """Plain-JAX replica of BayarConv2d.bayarConstraint()."""
    # normalize the k*k-1 free taps of each (cin, cout) pair to sum to 1
    kr = kernel_param / jnp.sum(kernel_param, axis=2, keepdims=True)
    ctr = (kernel_size * kernel_size) // 2
    real = jnp.concatenate([kr[:, :, :ctr], minus1, kr[:, :, ctr:]], axis=2)
    # NOTE: the original code does a raw reshape (cin, cout, k*k) -> (cout, cin, k, k)
    # with NO transpose; we reproduce that exactly (row-major reinterpret).
    return real.reshape(out_channels, in_channels, kernel_size, kernel_size)


def bayar_conv2d(x, real_kernel, stride=1, padding=0, patch_dtype=None):
    """F.conv2d(x, real_kernel, stride, padding) via a Pallas im2col GEMM.

    patch_dtype: dtype of the patch / weight operands fed to the MXU.
      Default keeps x.dtype (f32 here, so the demo matches XLA's f32 conv to
      1e-3).  On v6e/v7x with large images pass jnp.bfloat16 for a 2-4x MXU
      win and halved patch bytes (accumulation stays f32).
    """
    n, cin, h, w = x.shape
    cout, cin_w, k, _ = real_kernel.shape
    assert cin_w == cin
    if patch_dtype is None:
        patch_dtype = x.dtype

    hp, wp = h + 2 * padding, w + 2 * padding
    ho = (hp - k) // stride + 1
    wo = (wp - k) // stride + 1

    # "Wide" output: conv evaluated at every input position; valid/strided
    # positions are sliced out afterwards (free in XLA).
    lw = hp * wp                              # real wide-output lanes per image
    lw_o = _round_up(lw, 128)                 # 128-aligned lanes per image slab
    max_shift = (k - 1) * (wp + 1)            # largest tap lane-offset
    # Bottom zero rows provide both the tap halo and the 128-alignment tail.
    extra_rows = pl.cdiv(lw_o + max_shift - lw, wp)
    lp = (hp + extra_rows) * wp               # flattened length per image

    # Batch folding: several images per grid step (wider GEMM, fewer steps),
    # but keep >= 2 "parallel" steps when N >= 2 so both v7x TCs get work.
    b_tile = max(1, min(4, n // 2)) if n > 1 else 1
    n_pad = pl.cdiv(n, b_tile) * b_tile
    n_grid = n_pad // b_tile

    # SINGLE pad fusing batch pad, spatial conv padding, and the lane tail.
    x_pad = jnp.pad(x, ((0, n_pad - n), (0, 0),
                        (padding, padding + extra_rows), (padding, padding)))
    x_flat = x_pad.reshape(n_pad, cin, lp)

    ckk = cin * k * k
    ckk_pad = _round_up(ckk, 128)             # MXU contraction dim
    cout_pad = _round_up(cout, 8)             # sublane-aligned output rows

    # Weight matrix in tap-major order: column index = (ky*k + kx)*cin + ci,
    # zero-padded to a clean (8m, 128m) VMEM tile.  Keep cout on sublanes and
    # hp*wp on lanes (lane-dense output stores); do NOT flip the GEMM.
    w2 = jnp.transpose(real_kernel, (0, 2, 3, 1)).reshape(cout, ckk)
    w2 = jnp.pad(w2, ((0, cout_pad - cout), (0, ckk_pad - ckk))).astype(patch_dtype)

    kernel = functools.partial(
        _bayar_conv_kernel, cin=cin, k=k, wp=wp, lw_o=lw_o, b_tile=b_tile,
        ckk=ckk, ckk_pad=ckk_pad)

    # TODO(synk): for large images (e.g. 512x512), add a grid axis tiling the
    # lane (lw) dimension and cap the patch scratch at ~4 MiB (v7x has only
    # 64 MiB physical VMEM); the current full-image patch is fine at 16x16.
    out_wide = pl.pallas_call(
        kernel,
        out_shape=jax.ShapeDtypeStruct((cout_pad, n_pad * lw_o), x.dtype),
        grid=(n_grid,),
        in_specs=[
            pl.BlockSpec((b_tile, cin, lp), lambda i: (i, 0, 0)),
            pl.BlockSpec((cout_pad, ckk_pad), lambda i: (0, 0)),
        ],
        out_specs=pl.BlockSpec((cout_pad, b_tile * lw_o), lambda i: (0, i)),
        scratch_shapes=[pltpu.VMEM((ckk_pad, b_tile * lw_o), patch_dtype)],
        compiler_params=pltpu.CompilerParams(dimension_semantics=("parallel",)),
    )(x_flat, w2)

    # Drop channel/batch/lane padding, un-flatten, keep valid/strided pixels.
    # (The wide conv's right-edge columns read wrapped lanes from the next
    #  image row by design; they are sliced away here.)
    ow = out_wide.reshape(cout_pad, n_pad, lw_o)[:cout, :n, :lw]
    ow = ow.reshape(cout, n, hp, wp)
    ow = jnp.transpose(ow, (1, 0, 2, 3))
    return ow[:, :, : (ho - 1) * stride + 1 : stride,
                    : (wo - 1) * stride + 1 : stride]


if __name__ == "__main__":
    in_channels, out_channels, kernel_size, stride, padding = 4, 4, 5, 1, 0

    key = jax.random.PRNGKey(0)
    k_param_key, x_key = jax.random.split(key)

    # nn.Parameter(torch.rand(in, out, k*k - 1)) -> uniform [0, 1)
    kernel_param = jax.random.uniform(
        k_param_key, (in_channels, out_channels, kernel_size ** 2 - 1), jnp.float32
    )
    minus1 = -jnp.ones((in_channels, out_channels, 1), jnp.float32)

    x = jax.random.normal(x_key, (2, 4, 16, 16), jnp.float32)

    real_kernel = bayar_constraint(
        kernel_param, minus1, out_channels, in_channels, kernel_size
    )
    out = bayar_conv2d(x, real_kernel, stride=stride, padding=padding)
    out = jax.block_until_ready(out)

    # sanity check against XLA's conv
    ref = lax.conv_general_dilated(
        x, real_kernel, window_strides=(stride, stride), padding="VALID",
        dimension_numbers=("NCHW", "OIHW", "NCHW"),
    )
    assert out.shape == (2, 4, 12, 12), out.shape
    assert jnp.allclose(out, ref, atol=1e-3, rtol=1e-3), float(jnp.max(jnp.abs(out - ref)))

    print("KERNEL_OK")
</pallas_src>

<mosaic_0001>
module attributes {stable_mosaic.version = 11 : i64} {
  func.func @_bayar_conv_kernel(%arg0: i32, %arg1: memref<1x4x336xf32, #tpu.memory_space<vmem>>, %arg2: memref<8x128xf32, #tpu.memory_space<vmem>>, %arg3: memref<8x256xf32, #tpu.memory_space<vmem>>, %arg4: memref<128x256xf32, #tpu.memory_space<vmem>>) attributes {dimension_semantics = [#tpu.dimension_semantics<parallel>], iteration_bounds = array<i64: 2>, scalar_prefetch = 0 : i64, scratch_operands = 1 : i64, tpu.core_type = #tpu.core_type<tc>, window_params = [{transform_indices = @transform_0, window_bounds = array<i64: 1, 4, 336>}, {pipeline_mode = #tpu.pipeline_mode<synchronous>, transform_indices = @transform_1, window_bounds = array<i64: 8, 128>}, {transform_indices = @transform_2, window_bounds = array<i64: 8, 256>}]} {
    %c0_i32 = arith.constant 0 : i32
    %0 = arith.cmpi eq, %arg0, %c0_i32 : i32
    %1 = arith.extui %0 : i1 to i32
    %c0_i32_0 = arith.constant 0 : i32
    %2 = arith.cmpi ne, %1, %c0_i32_0 : i32
    scf.if %2 {
      %cst_23 = arith.constant 0.000000e+00 : f32
      %59 = vector.broadcast %cst_23 : f32 to vector<28x256xf32>
      %c100 = arith.constant 100 : index
      %c0_24 = arith.constant 0 : index
      %60 = vector.load %arg4[%c100, %c0_24] : memref<128x256xf32, #tpu.memory_space<vmem>>, vector<28x256xf32>
      tpu.vector_store %arg4[%c100, %c0_24], %59 {strides = array<i32>} : memref<128x256xf32, #tpu.memory_space<vmem>>, vector<28x256xf32>,
    } else {
    }
    %c0 = arith.constant 0 : index
    %c0_1 = arith.constant 0 : index
    %c0_2 = arith.constant 0 : index
    %3 = vector.load %arg1[%c0, %c0_1, %c0_2] : memref<1x4x336xf32, #tpu.memory_space<vmem>>, vector<1x4x336xf32>
    %4 = vector.shape_cast %3 : vector<1x4x336xf32> to vector<4x336xf32>
    %5 = vector.extract_strided_slice %4 {offsets = [0, 0], sizes = [4, 256], strides = [1, 1]} : vector<4x336xf32> to vector<4x256xf32>
    %6 = vector.extract_strided_slice %4 {offsets = [0, 1], sizes = [4, 256], strides = [1, 1]} : vector<4x336xf32> to vector<4x256xf32>
    %7 = tpu.concatenate %5, %6 in 0 : vector<4x256xf32>, vector<4x256xf32> -> vector<8x256xf32>
    %c0_3 = arith.constant 0 : index
    %c0_4 = arith.constant 0 : index
    %8 = vector.load %arg4[%c0_3, %c0_4] : memref<128x256xf32, #tpu.memory_space<vmem>>, vector<8x256xf32>
    tpu.vector_store %arg4[%c0_3, %c0_4], %7 {strides = array<i32>} : memref<128x256xf32, #tpu.memory_space<vmem>>, vector<8x256xf32>,
    %9 = vector.extract_strided_slice %4 {offsets = [0, 2], sizes = [4, 256], strides = [1, 1]} : vector<4x336xf32> to vector<4x256xf32>
    %10 = vector.extract_strided_slice %4 {offsets = [0, 3], sizes = [4, 256], strides = [1, 1]} : vector<4x336xf32> to vector<4x256xf32>
    %11 = tpu.concatenate %9, %10 in 0 : vector<4x256xf32>, vector<4x256xf32> -> vector<8x256xf32>
    %c8 = arith.constant 8 : index
    %c0_5 = arith.constant 0 : index
    %12 = vector.load %arg4[%c8, %c0_5] : memref<128x256xf32, #tpu.memory_space<vmem>>, vector<8x256xf32>
    tpu.vector_store %arg4[%c8, %c0_5], %11 {strides = array<i32>} : memref<128x256xf32, #tpu.memory_space<vmem>>, vector<8x256xf32>,
    %13 = vector.extract_strided_slice %4 {offsets = [0, 4], sizes = [4, 256], strides = [1, 1]} : vector<4x336xf32> to vector<4x256xf32>
    %14 = vector.extract_strided_slice %4 {offsets = [0, 16], sizes = [4, 256], strides = [1, 1]} : vector<4x336xf32> to vector<4x256xf32>
    %15 = tpu.concatenate %13, %14 in 0 : vector<4x256xf32>, vector<4x256xf32> -> vector<8x256xf32>
    %c16 = arith.constant 16 : index
    %c0_6 = arith.constant 0 : index
    %16 = vector.load %arg4[%c16, %c0_6] : memref<128x256xf32, #tpu.memory_space<vmem>>, vector<8x256xf32>
    tpu.vector_store %arg4[%c16, %c0_6], %15 {strides = array<i32>} : memref<128x256xf32, #tpu.memory_space<vmem>>, vector<8x256xf32>,
    %17 = vector.extract_strided_slice %4 {offsets = [0, 17], sizes = [4, 256], strides = [1, 1]} : vector<4x336xf32> to vector<4x256xf32>
    %18 = vector.extract_strided_slice %4 {offsets = [0, 18], sizes = [4, 256], strides = [1, 1]} : vector<4x336xf32> to vector<4x256xf32>
    %19 = tpu.concatenate %17, %18 in 0 : vector<4x256xf32>, vector<4x256xf32> -> vector<8x256xf32>
    %c24 = arith.constant 24 : index
    %c0_7 = arith.constant 0 : index
    %20 = vector.load %arg4[%c24, %c0_7] : memref<128x256xf32, #tpu.memory_space<vmem>>, vector<8x256xf32>
    tpu.vector_store %arg4[%c24, %c0_7], %19 {strides = array<i32>} : memref<128x256xf32, #tpu.memory_space<vmem>>, vector<8x256xf32>,
    %21 = vector.extract_strided_slice %4 {offsets = [0, 19], sizes = [4, 256], strides = [1, 1]} : vector<4x336xf32> to vector<4x256xf32>
    %22 = vector.extract_strided_slice %4 {offsets = [0, 20], sizes = [4, 256], strides = [1, 1]} : vector<4x336xf32> to vector<4x256xf32>
    %23 = tpu.concatenate %21, %22 in 0 : vector<4x256xf32>, vector<4x256xf32> -> vector<8x256xf32>
    %c32 = arith.constant 32 : index
    %c0_8 = arith.constant 0 : index
    %24 = vector.load %arg4[%c32, %c0_8] : memref<128x256xf32, #tpu.memory_space<vmem>>, vector<8x256xf32>
    tpu.vector_store %arg4[%c32, %c0_8], %23 {strides = array<i32>} : memref<128x256xf32, #tpu.memory_space<vmem>>, vector<8x256xf32>,
    %25 = vector.extract_strided_slice %4 {offsets = [0, 32], sizes = [4, 256], strides = [1, 1]} : vector<4x336xf32> to vector<4x256xf32>
    %26 = vector.extract_strided_slice %4 {offsets = [0, 33], sizes = [4, 256], strides = [1, 1]} : vector<4x336xf32> to vector<4x256xf32>
    %27 = tpu.concatenate %25, %26 in 0 : vector<4x256xf32>, vector<4x256xf32> -> vector<8x256xf32>
    %c40 = arith.constant 40 : index
    %c0_9 = arith.constant 0 : index
    %28 = vector.load %arg4[%c40, %c0_9] : memref<128x256xf32, #tpu.memory_space<vmem>>, vector<8x256xf32>
    tpu.vector_store %arg4[%c40, %c0_9], %27 {strides = array<i32>} : memref<128x256xf32, #tpu.memory_space<vmem>>, vector<8x256xf32>,
    %29 = vector.extract_strided_slice %4 {offsets = [0, 34], sizes = [4, 256], strides = [1, 1]} : vector<4x336xf32> to vector<4x256xf32>
    %30 = vector.extract_strided_slice %4 {offsets = [0, 35], sizes = [4, 256], strides = [1, 1]} : vector<4x336xf32> to vector<4x256xf32>
    %31 = tpu.concatenate %29, %30 in 0 : vector<4x256xf32>, vector<4x256xf32> -> vector<8x256xf32>
    %c48 = arith.constant 48 : index
    %c0_10 = arith.constant 0 : index
    %32 = vector.load %arg4[%c48, %c0_10] : memref<128x256xf32, #tpu.memory_space<vmem>>, vector<8x256xf32>
    tpu.vector_store %arg4[%c48, %c0_10], %31 {strides = array<i32>} : memref<128x256xf32, #tpu.memory_space<vmem>>, vector<8x256xf32>,
    %33 = vector.extract_strided_slice %4 {offsets = [0, 36], sizes = [4, 256], strides = [1, 1]} : vector<4x336xf32> to vector<4x256xf32>
    %34 = vector.extract_strided_slice %4 {offsets = [0, 48], sizes = [4, 256], strides = [1, 1]} : vector<4x336xf32> to vector<4x256xf32>
    %35 = tpu.concatenate %33, %34 in 0 : vector<4x256xf32>, vector<4x256xf32> -> vector<8x256xf32>
    %c56 = arith.constant 56 : index
    %c0_11 = arith.constant 0 : index
    %36 = vector.load %arg4[%c56, %c0_11] : memref<128x256xf32, #tpu.memory_space<vmem>>, vector<8x256xf32>
    tpu.vector_store %arg4[%c56, %c0_11], %35 {strides = array<i32>} : memref<128x256xf32, #tpu.memory_space<vmem>>, vector<8x256xf32>,
    %37 = vector.extract_strided_slice %4 {offsets = [0, 49], sizes = [4, 256], strides = [1, 1]} : vector<4x336xf32> to vector<4x256xf32>
    %38 = vector.extract_strided_slice %4 {offsets = [0, 50], sizes = [4, 256], strides = [1, 1]} : vector<4x336xf32> to vector<4x256xf32>
    %39 = tpu.concatenate %37, %38 in 0 : vector<4x256xf32>, vector<4x256xf32> -> vector<8x256xf32>
    %c64 = arith.constant 64 : index
    %c0_12 = arith.constant 0 : index
    %40 = vector.load %arg4[%c64, %c0_12] : memref<128x256xf32, #tpu.memory_space<vmem>>, vector<8x256xf32>
    tpu.vector_store %arg4[%c64, %c0_12], %39 {strides = array<i32>} : memref<128x256xf32, #tpu.memory_space<vmem>>, vector<8x256xf32>,
    %41 = vector.extract_strided_slice %4 {offsets = [0, 51], sizes = [4, 256], strides = [1, 1]} : vector<4x336xf32> to vector<4x256xf32>
    %42 = vector.extract_strided_slice %4 {offsets = [0, 52], sizes = [4, 256], strides = [1, 1]} : vector<4x336xf32> to vector<4x256xf32>
    %43 = tpu.concatenate %41, %42 in 0 : vector<4x256xf32>, vector<4x256xf32> -> vector<8x256xf32>
    %c72 = arith.constant 72 : index
    %c0_13 = arith.constant 0 : index
    %44 = vector.load %arg4[%c72, %c0_13] : memref<128x256xf32, #tpu.memory_space<vmem>>, vector<8x256xf32>
    tpu.vector_store %arg4[%c72, %c0_13], %43 {strides = array<i32>} : memref<128x256xf32, #tpu.memory_space<vmem>>, vector<8x256xf32>,
    %45 = vector.extract_strided_slice %4 {offsets = [0, 64], sizes = [4, 256], strides = [1, 1]} : vector<4x336xf32> to vector<4x256xf32>
    %46 = vector.extract_strided_slice %4 {offsets = [0, 65], sizes = [4, 256], strides = [1, 1]} : vector<4x336xf32> to vector<4x256xf32>
    %47 = tpu.concatenate %45, %46 in 0 : vector<4x256xf32>, vector<4x256xf32> -> vector<8x256xf32>
    %c80 = arith.constant 80 : index
    %c0_14 = arith.constant 0 : index
    %48 = vector.load %arg4[%c80, %c0_14] : memref<128x256xf32, #tpu.memory_space<vmem>>, vector<8x256xf32>
    tpu.vector_store %arg4[%c80, %c0_14], %47 {strides = array<i32>} : memref<128x256xf32, #tpu.memory_space<vmem>>, vector<8x256xf32>,
    %49 = vector.extract_strided_slice %4 {offsets = [0, 66], sizes = [4, 256], strides = [1, 1]} : vector<4x336xf32> to vector<4x256xf32>
    %50 = vector.extract_strided_slice %4 {offsets = [0, 67], sizes = [4, 256], strides = [1, 1]} : vector<4x336xf32> to vector<4x256xf32>
    %51 = tpu.concatenate %49, %50 in 0 : vector<4x256xf32>, vector<4x256xf32> -> vector<8x256xf32>
    %c88 = arith.constant 88 : index
    %c0_15 = arith.constant 0 : index
    %52 = vector.load %arg4[%c88, %c0_15] : memref<128x256xf32, #tpu.memory_space<vmem>>, vector<8x256xf32>
    tpu.vector_store %arg4[%c88, %c0_15], %51 {strides = array<i32>} : memref<128x256xf32, #tpu.memory_space<vmem>>, vector<8x256xf32>,
    %53 = vector.extract_strided_slice %4 {offsets = [0, 68], sizes = [4, 256], strides = [1, 1]} : vector<4x336xf32> to vector<4x256xf32>
    %c96 = arith.constant 96 : index
    %c0_16 = arith.constant 0 : index
    %54 = vector.load %arg4[%c96, %c0_16] : memref<128x256xf32, #tpu.memory_space<vmem>>, vector<4x256xf32>
    tpu.vector_store %arg4[%c96, %c0_16], %53 {strides = array<i32>} : memref<128x256xf32, #tpu.memory_space<vmem>>, vector<4x256xf32>,
    %c0_17 = arith.constant 0 : index
    %c0_18 = arith.constant 0 : index
    %55 = vector.load %arg2[%c0_17, %c0_18] : memref<8x128xf32, #tpu.memory_space<vmem>>, vector<8x128xf32>
    %c0_19 = arith.constant 0 : index
    %c0_20 = arith.constant 0 : index
    %56 = vector.load %arg4[%c0_19, %c0_20] : memref<128x256xf32, #tpu.memory_space<vmem>>, vector<128x256xf32>
    %cst = arith.constant dense<0.000000e+00> : vector<8x256xf32>
    %57 = tpu.matmul %55, %56, %cst {dimension_numbers = #tpu.dot_dimension_numbers<[1], [0], [0], [1], [0, 0, 1, 1], [], []>} : vector<8x128xf32>, vector<128x256xf32>, vector<8x256xf32> -> vector<8x256xf32>
    %c0_21 = arith.constant 0 : index
    %c0_22 = arith.constant 0 : index
    %58 = vector.load %arg3[%c0_21, %c0_22] : memref<8x256xf32, #tpu.memory_space<vmem>>, vector<8x256xf32>
    tpu.vector_store %arg3[%c0_21, %c0_22], %57 {strides = array<i32>} : memref<8x256xf32, #tpu.memory_space<vmem>>, vector<8x256xf32>,
    return
  }
  func.func @transform_0(%arg0: i32) -> (i32, i32, i32) {
    %c0_i32 = arith.constant 0 : i32
    %c0_i32_0 = arith.constant 0 : i32
    %c0_i32_1 = arith.constant 0 : i32
    return %arg0, %c0_i32, %c0_i32_0 : i32, i32, i32
  }
  func.func @transform_1(%arg0: i32) -> (i32, i32) {
    %c0_i32 = arith.constant 0 : i32
    %c0_i32_0 = arith.constant 0 : i32
    %c0_i32_1 = arith.constant 0 : i32
    return %c0_i32, %c0_i32_0 : i32, i32
  }
  func.func @transform_2(%arg0: i32) -> (i32, i32) {
    %c0_i32 = arith.constant 0 : i32
    %c0_i32_0 = arith.constant 0 : i32
    return %c0_i32, %arg0 : i32, i32
  }
}

</mosaic_0001>

<llo_original>
// kernel: tpu_custom_call.1
$region0: #{tpu_custom_call.1}
  #allocation0 [shape = 'u32[]', space=smem, size = 0x4, offset = 0x4, fixed_abs, tag = 'smem constant byte address 0x4 - core index']
  #allocation1 [shape = 'u32[72,128]{1,0:T(1,128)}', space=vmem, size = 0x9000, scoped, tag = 'internal scratch']
  #allocation2 [shape = 'f32[128,256]{1,0:T(8,128)}', space=vmem, size = 0x20000, scoped, tag = 'scratch operand']
  %s0 = inlined_call_operand.hbm [shape: f32[2,4,336], index: 0, kind: input, shape index: {}]
  %s1 = inlined_call_operand.hbm [shape: f32[8,128], index: 1, kind: input, shape index: {}]
  %s2 = inlined_call_operand.hbm [shape: f32[8,512], index: 2, kind: output, shape index: {}]
  %s3 = sld [smem:[#allocation0]]
  $region53: #{tpu_custom_call.1} parent=0
    _
  %s5 = ssub.s32 1, %s3
  %s6 = scalar_select 0, %s5, %s3
  $region1: #{tpu_custom_call.1} parent=0
    #allocation3 [shape = 'u8[12288]{0}', space=vmem, size = 0x3000, scoped, tag = 'input window, operand 0']
    #allocation4 [shape = 's32[2]{0}', space=sflag, size = 0x8, scoped, tag = 'scoped memory for tpu_custom_call.1']
    #allocation5 [shape = 's32[2]{0}', space=sflag, size = 0x8, scoped, tag = 'scoped memory for tpu_custom_call.1']
    #allocation6 [shape = 'u8[4096]{0}', space=vmem, size = 0x1000, scoped, tag = 'input window, operand 1, single buffered']
    #allocation7 [shape = 's32[1]{0}', space=sflag, size = 0x4, scoped, tag = 'scoped memory for tpu_custom_call.1']
    #allocation8 [shape = 'u8[16384]{0}', space=vmem, size = 0x4000, scoped, tag = 'output window, operand 0']
    %7 = vsyncpa [#allocation4], 0
    %s8 = scalar_lea.sflag [#allocation4], 1
    %9 = vsyncpa %s8, 0
    %10 = vsyncpa [#allocation7], 0
    %11 = vsyncpa [#allocation5], 0
    %s12 = scalar_lea.sflag [#allocation5], 1
    %13 = vsyncpa %s12, 0
    loop: start=0, step=1, limit=4
    $region2: #{tpu_custom_call.1} parent=1 // loop_pre_header
      _
    $region3: #{tpu_custom_call.1} parent=1 // loop_header
      %s15 = sphi 0, %s19
      %p16 = scmp.ge.s32.totalorder %s15, 4
      %s25 = sphi 0, %s27
      %s28 = sphi 0, %s25
      %s29 = sphi 0, %s28
      %s45 = sphi 0, %s29
      %s49 = sphi 0, %s49
      %s51 = sphi 0, %s49
      %s52 = sphi 0, %s51
      %s66 = sphi 0, %s52
      %s72 = sphi 0, %s74
      %s75 = sphi 0, %s72
      %s76 = sphi 0, %s75
      %s92 = sphi 0, %s76
    $region4: #{tpu_custom_call.1} parent=1 // loop_header_branch
      %18 = sbr.rel (%p16) target = $region8
    $region5: #{tpu_custom_call.1} parent=1 // loop_body
      %s20 = ssub.s32 %s15, 1
      %s21 = ssub.s32 %s15, 2
      %s22 = sadd.s32 %s15, 1
      %s23 = ssub.s32 %s15, %s22
      %p24 = scmp.eq.s32.totalorder %s23, 0
      %s26 = sadd.s32 %s25, 1
      %s27 = scalar_select %p24, %s25, %s26
      %p30 = pneg %p24
      %p31 = scmp.eq.s32.totalorder %s15, 1
      %p32 = por %p30, %p31
      %p33 = scmp.ne.s32.totalorder %s25, %s28
      %p34 = scmp.eq.s32.totalorder %s15, 0
      %p35 = por %p33, %p34
      %p36 = scmp.ne.s32.totalorder %s25, %s28
      %p37 = scmp.eq.s32.totalorder %s20, 1
      %p38 = por %p36, %p37
      %p39 = scmp.ne.s32.totalorder %s28, %s29
      %p40 = scmp.eq.s32.totalorder %s20, 0
      %p41 = por %p39, %p40
      %p42 = scmp.ne.s32.totalorder %s28, %s29
      %p43 = scmp.eq.s32.totalorder %s21, 1
      %p44 = por %p42, %p43
      %p46 = scmp.ne.s32.totalorder %s29, %s45
      %p47 = scmp.eq.s32.totalorder %s21, 0
      %p48 = por %p46, %p47
      %s50 = sadd.s32 %s49, 1
      %p53 = scmp.eq.s32.totalorder %s15, 1
      %p54 = scmp.ne.s32.totalorder %s49, %s51
      %p55 = scmp.eq.s32.totalorder %s15, 0
      %p56 = por %p54, %p55
      %p57 = scmp.ne.s32.totalorder %s49, %s51
      %p58 = scmp.eq.s32.totalorder %s20, 1
      %p59 = por %p57, %p58
      %p60 = scmp.ne.s32.totalorder %s51, %s52
      %p61 = scmp.eq.s32.totalorder %s20, 0
      %p62 = por %p60, %p61
      %p63 = scmp.ne.s32.totalorder %s51, %s52
      %p64 = scmp.eq.s32.totalorder %s21, 1
      %p65 = por %p63, %p64
      %p67 = scmp.ne.s32.totalorder %s52, %s66
      %p68 = scmp.eq.s32.totalorder %s21, 0
      %p69 = por %p67, %p68
      %s70 = ssub.s32 %s15, %s22
      %p71 = scmp.eq.s32.totalorder %s70, 0
      %s73 = sadd.s32 %s72, 1
      %s74 = scalar_select %p71, %s72, %s73
      %p77 = pneg %p71
      %p78 = scmp.eq.s32.totalorder %s15, 1
      %p79 = por %p77, %p78
      %p80 = scmp.ne.s32.totalorder %s72, %s75
      %p81 = scmp.eq.s32.totalorder %s15, 0
      %p82 = por %p80, %p81
      %p83 = scmp.ne.s32.totalorder %s72, %s75
      %p84 = scmp.eq.s32.totalorder %s20, 1
      %p85 = por %p83, %p84
      %p86 = scmp.ne.s32.totalorder %s75, %s76
      %p87 = scmp.eq.s32.totalorder %s20, 0
      %p88 = por %p86, %p87
      %p89 = scmp.ne.s32.totalorder %s75, %s76
      %p90 = scmp.eq.s32.totalorder %s21, 1
      %p91 = por %p89, %p90
      %p93 = scmp.ne.s32.totalorder %s76, %s92
      %p94 = scmp.eq.s32.totalorder %s21, 0
      %p95 = por %p93, %p94
      %p96 = scmp.le.s32.totalorder 1, %s15
      %p97 = scmp.lt.s32.totalorder %s15, 3
      %p98 = pnand %p96, %p97
      %p99 = pneg %p98
      // Predicated region
      $region9: #{tpu_custom_call.1} parent=5 // pred_check
        _
      $region10: #{tpu_custom_call.1} parent=5 // pred_check_branch
        %101 = sbr.rel (%p98) target = $region12
      $region11: #{tpu_custom_call.1} parent=5 // pred_region
        %s102 = ssub.s32 %s15, 1
        // Predicated region
        $region13: #{tpu_custom_call.1} parent=11 // pred_check
          %p103 = pneg %p62
        $region14: #{tpu_custom_call.1} parent=11 // pred_check_branch
          %105 = sbr.rel (%p103) target = $region16
        $region15: #{tpu_custom_call.1} parent=11 // pred_region
          %107 = vsyncadd [#allocation7], 0
          %s109 = sshll.u32 %s1, 4
          %s110 = int_to_ptr.hbm [resolvable:$true] %s109
          %s111 = sshll.u32 [#allocation6], 4
          %s112 = int_to_ptr.vmem [resolvable:$true] %s111
          %114 = dma.hbm_to_vmem [thread:$0]  %s110, 128, %s112, [#allocation7]
        $region16: #{tpu_custom_call.1} parent=11 // pred_fallthru
          _
      $region12: #{tpu_custom_call.1} parent=5 // pred_fallthru
        _
      %p115 = scmp.lt.s32.totalorder %s15, 2
      // Predicated region
      $region17: #{tpu_custom_call.1} parent=5 // pred_check
        %p116 = pneg %p115
      $region18: #{tpu_custom_call.1} parent=5 // pred_check_branch
        %118 = sbr.rel (%p116) target = $region20
      $region19: #{tpu_custom_call.1} parent=5 // pred_region
        // Predicated region
        $region21: #{tpu_custom_call.1} parent=19 // pred_check
          %p119 = pneg %p35
        $region22: #{tpu_custom_call.1} parent=19 // pred_check_branch
          %121 = sbr.rel (%p119) target = $region24
        $region23: #{tpu_custom_call.1} parent=19 // pred_region
          %s122 = sand.u32 %s25, 1
          %s123 = scalar_lea.sflag [#allocation4], %s122
          %s124 = sand.u32 %s25, 1
          %s125 = smul.addr %s124, 12
          %s126 = scalar_lea.vmem [#allocation3], %s125
          %128 = vsyncadd %s123, 0
          %s129 = smul.addr %s15, 3
          %s130 = smul.addr %s129, 4
          %s131 = scalar_lea.hbm %s0, %s130
          %s133 = sshll.u32 %s131, 4
          %s134 = int_to_ptr.hbm [resolvable:$true] %s133
          %s135 = sshll.u32 %s126, 4
          %s136 = int_to_ptr.vmem [resolvable:$true] %s135
          %138 = dma.hbm_to_vmem [thread:$0]  %s134, 192, %s136, %s123
        $region24: #{tpu_custom_call.1} parent=19 // pred_fallthru
          _
      $region20: #{tpu_custom_call.1} parent=5 // pred_fallthru
        _
      %p139 = scmp.le.s32.totalorder 1, %s15
      %p140 = scmp.lt.s32.totalorder %s15, 3
      %p141 = pnand %p139, %p140
      %p142 = pneg %p141
      // Predicated region
      $region25: #{tpu_custom_call.1} parent=5 // pred_check
        _
      $region26: #{tpu_custom_call.1} parent=5 // pred_check_branch
        %144 = sbr.rel (%p141) target = $region28
      $region27: #{tpu_custom_call.1} parent=5 // pred_region
        %s145 = ssub.s32 %s15, 1
        %s146 = sand.u32 %s28, 1
        %s147 = scalar_lea.sflag [#allocation4], %s146
        %s148 = sand.u32 %s28, 1
        %s149 = smul.addr %s148, 12
        %s150 = scalar_lea.vmem [#allocation3], %s149
        // Predicated region
        $region29: #{tpu_custom_call.1} parent=27 // pred_check
          %p151 = pneg %p41
        $region30: #{tpu_custom_call.1} parent=27 // pred_check_branch
          %153 = sbr.rel (%p151) target = $region32
        $region31: #{tpu_custom_call.1} parent=27 // pred_region
          %155 = dma.done %s147, 192
        $region32: #{tpu_custom_call.1} parent=27 // pred_fallthru
          _
        // Predicated region
        $region33: #{tpu_custom_call.1} parent=27 // pred_check
          %p156 = pneg %p62
        $region34: #{tpu_custom_call.1} parent=27 // pred_check_branch
          %158 = sbr.rel (%p156) target = $region36
        $region35: #{tpu_custom_call.1} parent=27 // pred_region
          %160 = dma.done [#allocation7], 128
        $region36: #{tpu_custom_call.1} parent=27 // pred_fallthru
          _
        %s161 = sand.u32 %s28, 1
        %s162 = scalar_lea.sflag [#allocation4], %s161
        %s163 = sand.u32 %s28, 1
        %s164 = smul.addr %s163, 12
        %s165 = scalar_lea.vmem [#allocation3], %s164
        %p166 = pneg %p41
        %p167 = pneg %p38
        %p168 = pneg %p62
        %p169 = pneg %p59
        %p170 = pneg %p88
        %p171 = pneg %p85
        %s172 = sand.u32 %s75, 1
        %s173 = scalar_lea.sflag [#allocation5], %s172
        %s174 = sand.u32 %s75, 1
        %s175 = smul.addr %s174, 16
        %s176 = scalar_lea.vmem [#allocation8], %s175
        %s177 = smul.u32 2, %s20
        %p178 = scmp.eq.s32.totalorder %s20, 0
        // Predicated region
        $region37: #{tpu_custom_call.1} parent=27 // pred_check
          %p179 = pneg %p178
        $region38: #{tpu_custom_call.1} parent=27 // pred_check_branch
          %181 = sbr.rel (%p179) target = $region40
        $region39: #{tpu_custom_call.1} parent=27 // pred_region
          %182 = vst [vmem:[#allocation2 + $0xc0] sm:$0xf0] 0.0
          %183 = vst [vmem:[#allocation2 + $0xc8] sm:$0xf0] 0.0
          %184 = vst [vmem:[#allocation2 + $0xd0] sm:$0xff] 0.0
          %185 = vst [vmem:[#allocation2 + $0xd8] sm:$0xff] 0.0
          %186 = vst [vmem:[#allocation2 + $0xe0] sm:$0xff] 0.0
          %187 = vst [vmem:[#allocation2 + $0xe8] sm:$0xff] 0.0
          %188 = vst [vmem:[#allocation2 + $0xf0] sm:$0xff] 0.0
          %189 = vst [vmem:[#allocation2 + $0xf8] sm:$0xff] 0.0
        $region40: #{tpu_custom_call.1} parent=27 // pred_fallthru
          _
        %v190 = vld [vmem:[%s150] sm:$0xff]
        %v191 = vld [vmem:[%s150 + $0x8] sm:$0xf]
        %193 = vst [vmem:[#allocation1] ss:$2 sm:$0xff] %v190
        %v194 = vld.sshfl [vmem:[#allocation1] sm:$0xff pattern:$0x75316420]
        %v195 = vld.sshfl [vmem:[#allocation1 + $0x8] sm:$0xff pattern:$0x75316420]
        %s199 = scalar_lea.vmem [#allocation1], 1
        %200 = vst [vmem:[%s199] ss:$2 sm:$0xff] %v190
        %s201 = scalar_lea.vmem [#allocation1], 17
        %202 = vst [vmem:[%s201] ss:$2 sm:$0xff] %v191
        %v203 = vld.sshfl [vmem:[#allocation1] sm:$0xff pattern:$0x75316420]
        %v204 = vld.sshfl [vmem:[#allocation1 + $0x8] sm:$0xff pattern:$0x75316420]
        %v205 = vld.sshfl [vmem:[#allocation1 + $0x10] sm:$0xff pattern:$0x75316420]
        %206 = vrot.lane.b32.xlu0 %v203, 127
        %v207 = vpop.permute.xlu0 %206
        %208 = vrot.lane.b32.xlu0 %v204, 127
        %v209 = vpop.permute.xlu0 %208
        %210 = vrot.lane.b32.xlu0 %v205, 127
        %v211 = vpop.permute.xlu0 %210
        %vm212 = vcmask 1039360
        %v213 = vsel %vm212, %v207, %v209
        %v214 = vsel %vm212, %v209, %v211
        %vm217 = vcmask 1043456
        %v218 = vsel %vm217, %v194, %v213
        %v219 = vsel %vm217, %v195, %v214
        %220 = vst [vmem:[#allocation2] sm:$0xff] %v218
        %221 = vst [vmem:[#allocation2 + $0x8] sm:$0xff] %v219
        %222 = vst [vmem:[#allocation1] ss:$2 sm:$0xff] %v190
        %s223 = scalar_lea.vmem [#allocation1], 16
        %224 = vst [vmem:[%s223] ss:$2 sm:$0xff] %v191
        %v225 = vld.sshfl [vmem:[#allocation1] sm:$0xff pattern:$0x75316420]
        %v226 = vld.sshfl [vmem:[#allocation1 + $0x8] sm:$0xff pattern:$0x75316420]
        %v227 = vld.sshfl [vmem:[#allocation1 + $0x10] sm:$0xff pattern:$0x75316420]
        %s231 = scalar_lea.vmem [#allocation1], 1
        %232 = vst [vmem:[%s231] ss:$2 sm:$0xff] %v190
        %s233 = scalar_lea.vmem [#allocation1], 17
        %234 = vst [vmem:[%s233] ss:$2 sm:$0xff] %v191
        %v235 = vld.sshfl [vmem:[#allocation1] sm:$0xff pattern:$0x75316420]
        %v236 = vld.sshfl [vmem:[#allocation1 + $0x8] sm:$0xff pattern:$0x75316420]
        %v237 = vld.sshfl [vmem:[#allocation1 + $0x10] sm:$0xff pattern:$0x75316420]
        %238 = vrot.lane.b32.xlu0 %v235, 127
        %v239 = vpop.permute.xlu0 %238
        %240 = vrot.lane.b32.xlu0 %v236, 127
        %v241 = vpop.permute.xlu0 %240
        %242 = vrot.lane.b32.xlu0 %v237, 127
        %v243 = vpop.permute.xlu0 %242
        %v244 = vsel %vm212, %v239, %v241
        %v245 = vsel %vm212, %v241, %v243
        %v249 = vsel %vm217, %v225, %v244
        %v250 = vsel %vm217, %v226, %v245
        %v251 = vsel %vm217, %v227, %v243
        %255 = vrot.lane.b32.xlu0 %v249, 126
        %v256 = vpop.permute.xlu0 %255
        %257 = vrot.lane.b32.xlu0 %v250, 126
        %v258 = vpop.permute.xlu0 %257
        %259 = vrot.lane.b32.xlu0 %v251, 126
        %v260 = vpop.permute.xlu0 %259
        %vm261 = vcmask 1031168
        %v262 = vsel %vm261, %v256, %v258
        %v263 = vsel %vm261, %v258, %v260
        %266 = vst [vmem:[#allocation2 + $0x10] sm:$0xff] %v262
        %267 = vst [vmem:[#allocation2 + $0x18] sm:$0xff] %v263
        %268 = vst [vmem:[#allocation1] ss:$2 sm:$0xff] %v190
        %s269 = scalar_lea.vmem [#allocation1], 16
        %270 = vst [vmem:[%s269] ss:$2 sm:$0xff] %v191
        %v271 = vld.sshfl [vmem:[#allocation1] sm:$0xff pattern:$0x75316420]
        %v272 = vld.sshfl [vmem:[#allocation1 + $0x8] sm:$0xff pattern:$0x75316420]
        %v273 = vld.sshfl [vmem:[#allocation1 + $0x10] sm:$0xff pattern:$0x75316420]
        %s277 = scalar_lea.vmem [#allocation1], 1
        %278 = vst [vmem:[%s277] ss:$2 sm:$0xff] %v190
        %s279 = scalar_lea.vmem [#allocation1], 17
        %280 = vst [vmem:[%s279] ss:$2 sm:$0xff] %v191
        %v281 = vld.sshfl [vmem:[#allocation1] sm:$0xff pattern:$0x75316420]
        %v282 = vld.sshfl [vmem:[#allocation1 + $0x8] sm:$0xff pattern:$0x75316420]
        %v283 = vld.sshfl [vmem:[#allocation1 + $0x10] sm:$0xff pattern:$0x75316420]
        %284 = vrot.lane.b32.xlu0 %v281, 116
        %v285 = vpop.permute.xlu0 %284
        %286 = vrot.lane.b32.xlu0 %v282, 116
        %v287 = vpop.permute.xlu0 %286
        %288 = vrot.lane.b32.xlu0 %v283, 116
        %v289 = vpop.permute.xlu0 %288
        %vm290 = vcmask 949248
        %v291 = vsel %vm290, %v285, %v287
        %v292 = vsel %vm290, %v287, %v289
        %v296 = vsel %vm217, %v271, %v291
        %v297 = vsel %vm217, %v272, %v292
        %v298 = vsel %vm217, %v273, %v289
        %302 = vrot.lane.b32.xlu0 %v296, 124
        %v303 = vpop.permute.xlu0 %302
        %304 = vrot.lane.b32.xlu0 %v297, 124
        %v305 = vpop.permute.xlu0 %304
        %306 = vrot.lane.b32.xlu0 %v298, 124
        %v307 = vpop.permute.xlu0 %306
        %vm308 = vcmask 1014784
        %v309 = vsel %vm308, %v303, %v305
        %v310 = vsel %vm308, %v305, %v307
        %313 = vst [vmem:[#allocation2 + $0x20] sm:$0xff] %v309
        %314 = vst [vmem:[#allocation2 + $0x28] sm:$0xff] %v310
        %315 = vst [vmem:[#allocation1] ss:$2 sm:$0xff] %v190
        %s316 = scalar_lea.vmem [#allocation1], 16
        %317 = vst [vmem:[%s316] ss:$2 sm:$0xff] %v191
        %v318 = vld.sshfl [vmem:[#allocation1] sm:$0xff pattern:$0x75316420]
        %v319 = vld.sshfl [vmem:[#allocation1 + $0x8] sm:$0xff pattern:$0x75316420]
        %v320 = vld.sshfl [vmem:[#allocation1 + $0x10] sm:$0xff pattern:$0x75316420]
        %s324 = scalar_lea.vmem [#allocation1], 1
        %325 = vst [vmem:[%s324] ss:$2 sm:$0xff] %v190
        %s326 = scalar_lea.vmem [#allocation1], 17
        %327 = vst [vmem:[%s326] ss:$2 sm:$0xff] %v191
        %v328 = vld.sshfl [vmem:[#allocation1] sm:$0xff pattern:$0x75316420]
        %v329 = vld.sshfl [vmem:[#allocation1 + $0x8] sm:$0xff pattern:$0x75316420]
        %v330 = vld.sshfl [vmem:[#allocation1 + $0x10] sm:$0xff pattern:$0x75316420]
        %331 = vrot.lane.b32.xlu0 %v328, 127
        %v332 = vpop.permute.xlu0 %331
        %333 = vrot.lane.b32.xlu0 %v329, 127
        %v334 = vpop.permute.xlu0 %333
        %335 = vrot.lane.b32.xlu0 %v330, 127
        %v336 = vpop.permute.xlu0 %335
        %v337 = vsel %vm212, %v332, %v334
        %v338 = vsel %vm212, %v334, %v336
        %v342 = vsel %vm217, %v318, %v337
        %v343 = vsel %vm217, %v319, %v338
        %v344 = vsel %vm217, %v320, %v336
        %348 = vrot.lane.b32.xlu0 %v342, 111
        %v349 = vpop.permute.xlu0 %348
        %350 = vrot.lane.b32.xlu0 %v343, 111
        %v351 = vpop.permute.xlu0 %350
        %352 = vrot.lane.b32.xlu0 %v344, 111
        %v353 = vpop.permute.xlu0 %352
        %vm354 = vcmask 908288
        %v355 = vsel %vm354, %v349, %v351
        %v356 = vsel %vm354, %v351, %v353
        %359 = vst [vmem:[#allocation2 + $0x30] sm:$0xff] %v355
        %360 = vst [vmem:[#allocation2 + $0x38] sm:$0xff] %v356
        %361 = vst [vmem:[#allocation1] ss:$2 sm:$0xff] %v190
        %s362 = scalar_lea.vmem [#allocation1], 16
        %363 = vst [vmem:[%s362] ss:$2 sm:$0xff] %v191
        %v364 = vld.sshfl [vmem:[#allocation1] sm:$0xff pattern:$0x75316420]
        %v365 = vld.sshfl [vmem:[#allocation1 + $0x8] sm:$0xff pattern:$0x75316420]
        %v366 = vld.sshfl [vmem:[#allocation1 + $0x10] sm:$0xff pattern:$0x75316420]
        %s370 = scalar_lea.vmem [#allocation1], 1
        %371 = vst [vmem:[%s370] ss:$2 sm:$0xff] %v190
        %s372 = scalar_lea.vmem [#allocation1], 17
        %373 = vst [vmem:[%s372] ss:$2 sm:$0xff] %v191
        %v374 = vld.sshfl [vmem:[#allocation1] sm:$0xff pattern:$0x75316420]
        %v375 = vld.sshfl [vmem:[#allocation1 + $0x8] sm:$0xff pattern:$0x75316420]
        %v376 = vld.sshfl [vmem:[#allocation1 + $0x10] sm:$0xff pattern:$0x75316420]
        %377 = vrot.lane.b32.xlu0 %v374, 127
        %v378 = vpop.permute.xlu0 %377
        %379 = vrot.lane.b32.xlu0 %v375, 127
        %v380 = vpop.permute.xlu0 %379
        %381 = vrot.lane.b32.xlu0 %v376, 127
        %v382 = vpop.permute.xlu0 %381
        %v383 = vsel %vm212, %v378, %v380
        %v384 = vsel %vm212, %v380, %v382
        %v388 = vsel %vm217, %v364, %v383
        %v389 = vsel %vm217, %v365, %v384
        %v390 = vsel %vm217, %v366, %v382
        %394 = vrot.lane.b32.xlu0 %v388, 109
        %v395 = vpop.permute.xlu0 %394
        %396 = vrot.lane.b32.xlu0 %v389, 109
        %v397 = vpop.permute.xlu0 %396
        %398 = vrot.lane.b32.xlu0 %v390, 109
        %v399 = vpop.permute.xlu0 %398
        %vm400 = vcmask 891904
        %v401 = vsel %vm400, %v395, %v397
        %v402 = vsel %vm400, %v397, %v399
        %405 = vst [vmem:[#allocation2 + $0x40] sm:$0xff] %v401
        %406 = vst [vmem:[#allocation2 + $0x48] sm:$0xff] %v402
        %407 = vst [vmem:[#allocation1] ss:$2 sm:$0xff] %v190
        %s408 = scalar_lea.vmem [#allocation1], 16
        %409 = vst [vmem:[%s408] ss:$2 sm:$0xff] %v191
        %v410 = vld.sshfl [vmem:[#allocation1] sm:$0xff pattern:$0x75316420]
        %v411 = vld.sshfl [vmem:[#allocation1 + $0x8] sm:$0xff pattern:$0x75316420]
        %v412 = vld.sshfl [vmem:[#allocation1 + $0x10] sm:$0xff pattern:$0x75316420]
        %s416 = scalar_lea.vmem [#allocation1], 1
        %417 = vst [vmem:[%s416] ss:$2 sm:$0xff] %v190
        %s418 = scalar_lea.vmem [#allocation1], 17
        %419 = vst [vmem:[%s418] ss:$2 sm:$0xff] %v191
        %v420 = vld.sshfl [vmem:[#allocation1] sm:$0xff pattern:$0x75316420]
        %v421 = vld.sshfl [vmem:[#allocation1 + $0x8] sm:$0xff pattern:$0x75316420]
        %v422 = vld.sshfl [vmem:[#allocation1 + $0x10] sm:$0xff pattern:$0x75316420]
        %423 = vrot.lane.b32.xlu0 %v420, 127
        %v424 = vpop.permute.xlu0 %423
        %425 = vrot.lane.b32.xlu0 %v421, 127
        %v426 = vpop.permute.xlu0 %425
        %427 = vrot.lane.b32.xlu0 %v422, 127
        %v428 = vpop.permute.xlu0 %427
        %v429 = vsel %vm212, %v424, %v426
        %v430 = vsel %vm212, %v426, %v428
        %v434 = vsel %vm217, %v410, %v429
        %v435 = vsel %vm217, %v411, %v430
        %v436 = vsel %vm217, %v412, %v428
        %440 = vrot.lane.b32.xlu0 %v434, 96
        %v441 = vpop.permute.xlu0 %440
        %442 = vrot.lane.b32.xlu0 %v435, 96
        %v443 = vpop.permute.xlu0 %442
        %444 = vrot.lane.b32.xlu0 %v436, 96
        %v445 = vpop.permute.xlu0 %444
        %vm446 = vcmask 785408
        %v447 = vsel %vm446, %v441, %v443
        %v448 = vsel %vm446, %v443, %v445
        %451 = vst [vmem:[#allocation2 + $0x50] sm:$0xff] %v447
        %452 = vst [vmem:[#allocation2 + $0x58] sm:$0xff] %v448
        %453 = vst [vmem:[#allocation1] ss:$2 sm:$0xff] %v190
        %s454 = scalar_lea.vmem [#allocation1], 16
        %455 = vst [vmem:[%s454] ss:$2 sm:$0xff] %v191
        %v456 = vld.sshfl [vmem:[#allocation1] sm:$0xff pattern:$0x75316420]
        %v457 = vld.sshfl [vmem:[#allocation1 + $0x8] sm:$0xff pattern:$0x75316420]
        %v458 = vld.sshfl [vmem:[#allocation1 + $0x10] sm:$0xff pattern:$0x75316420]
        %s462 = scalar_lea.vmem [#allocation1], 1
        %463 = vst [vmem:[%s462] ss:$2 sm:$0xff] %v190
        %s464 = scalar_lea.vmem [#allocation1], 17
        %465 = vst [vmem:[%s464] ss:$2 sm:$0xff] %v191
        %v466 = vld.sshfl [vmem:[#allocation1] sm:$0xff pattern:$0x75316420]
        %v467 = vld.sshfl [vmem:[#allocation1 + $0x8] sm:$0xff pattern:$0x75316420]
        %v468 = vld.sshfl [vmem:[#allocation1 + $0x10] sm:$0xff pattern:$0x75316420]
        %469 = vrot.lane.b32.xlu0 %v466, 127
        %v470 = vpop.permute.xlu0 %469
        %471 = vrot.lane.b32.xlu0 %v467, 127
        %v472 = vpop.permute.xlu0 %471
        %473 = vrot.lane.b32.xlu0 %v468, 127
        %v474 = vpop.permute.xlu0 %473
        %v475 = vsel %vm212, %v470, %v472
        %v476 = vsel %vm212, %v472, %v474
        %v480 = vsel %vm217, %v456, %v475
        %v481 = vsel %vm217, %v457, %v476
        %v482 = vsel %vm217, %v458, %v474
        %486 = vrot.lane.b32.xlu0 %v480, 94
        %v487 = vpop.permute.xlu0 %486
        %488 = vrot.lane.b32.xlu0 %v481, 94
        %v489 = vpop.permute.xlu0 %488
        %490 = vrot.lane.b32.xlu0 %v482, 94
        %v491 = vpop.permute.xlu0 %490
        %vm492 = vcmask 769024
        %v493 = vsel %vm492, %v487, %v489
        %v494 = vsel %vm492, %v489, %v491
        %497 = vst [vmem:[#allocation2 + $0x60] sm:$0xff] %v493
        %498 = vst [vmem:[#allocation2 + $0x68] sm:$0xff] %v494
        %499 = vst [vmem:[#allocation1] ss:$2 sm:$0xff] %v190
        %s500 = scalar_lea.vmem [#allocation1], 16
        %501 = vst [vmem:[%s500] ss:$2 sm:$0xff] %v191
        %v502 = vld.sshfl [vmem:[#allocation1] sm:$0xff pattern:$0x75316420]
        %v503 = vld.sshfl [vmem:[#allocation1 + $0x8] sm:$0xff pattern:$0x75316420]
        %v504 = vld.sshfl [vmem:[#allocation1 + $0x10] sm:$0xff pattern:$0x75316420]
        %s508 = scalar_lea.vmem [#allocation1], 1
        %509 = vst [vmem:[%s508] ss:$2 sm:$0xff] %v190
        %s510 = scalar_lea.vmem [#allocation1], 17
        %511 = vst [vmem:[%s510] ss:$2 sm:$0xff] %v191
        %v512 = vld.sshfl [vmem:[#allocation1] sm:$0xff pattern:$0x75316420]
        %v513 = vld.sshfl [vmem:[#allocation1 + $0x8] sm:$0xff pattern:$0x75316420]
        %v514 = vld.sshfl [vmem:[#allocation1 + $0x10] sm:$0xff pattern:$0x75316420]
        %515 = vrot.lane.b32.xlu0 %v512, 116
        %v516 = vpop.permute.xlu0 %515
        %517 = vrot.lane.b32.xlu0 %v513, 116
        %v518 = vpop.permute.xlu0 %517
        %519 = vrot.lane.b32.xlu0 %v514, 116
        %v520 = vpop.permute.xlu0 %519
        %v521 = vsel %vm290, %v516, %v518
        %v522 = vsel %vm290, %v518, %v520
        %v526 = vsel %vm217, %v502, %v521
        %v527 = vsel %vm217, %v503, %v522
        %v528 = vsel %vm217, %v504, %v520
        %532 = vrot.lane.b32.xlu0 %v526, 92
        %v533 = vpop.permute.xlu0 %532
        %534 = vrot.lane.b32.xlu0 %v527, 92
        %v535 = vpop.permute.xlu0 %534
        %536 = vrot.lane.b32.xlu0 %v528, 92
        %v537 = vpop.permute.xlu0 %536
        %vm538 = vcmask 752640
        %v539 = vsel %vm538, %v533, %v535
        %v540 = vsel %vm538, %v535, %v537
        %543 = vst [vmem:[#allocation2 + $0x70] sm:$0xff] %v539
        %544 = vst [vmem:[#allocation2 + $0x78] sm:$0xff] %v540
        %545 = vst [vmem:[#allocation1] ss:$2 sm:$0xff] %v190
        %s546 = scalar_lea.vmem [#allocation1], 16
        %547 = vst [vmem:[%s546] ss:$2 sm:$0xff] %v191
        %v548 = vld.sshfl [vmem:[#allocation1] sm:$0xff pattern:$0x75316420]
        %v549 = vld.sshfl [vmem:[#allocation1 + $0x8] sm:$0xff pattern:$0x75316420]
        %v550 = vld.sshfl [vmem:[#allocation1 + $0x10] sm:$0xff pattern:$0x75316420]
        %s554 = scalar_lea.vmem [#allocation1], 1
        %555 = vst [vmem:[%s554] ss:$2 sm:$0xff] %v190
        %s556 = scalar_lea.vmem [#allocation1], 17
        %557 = vst [vmem:[%s556] ss:$2 sm:$0xff] %v191
        %v558 = vld.sshfl [vmem:[#allocation1] sm:$0xff pattern:$0x75316420]
        %v559 = vld.sshfl [vmem:[#allocation1 + $0x8] sm:$0xff pattern:$0x75316420]
        %v560 = vld.sshfl [vmem:[#allocation1 + $0x10] sm:$0xff pattern:$0x75316420]
        %561 = vrot.lane.b32.xlu0 %v558, 127
        %v562 = vpop.permute.xlu0 %561
        %563 = vrot.lane.b32.xlu0 %v559, 127
        %v564 = vpop.permute.xlu0 %563
        %565 = vrot.lane.b32.xlu0 %v560, 127
        %v566 = vpop.permute.xlu0 %565
        %v567 = vsel %vm212, %v562, %v564
        %v568 = vsel %vm212, %v564, %v566
        %v572 = vsel %vm217, %v548, %v567
        %v573 = vsel %vm217, %v549, %v568
        %v574 = vsel %vm217, %v550, %v566
        %578 = vrot.lane.b32.xlu0 %v572, 79
        %v579 = vpop.permute.xlu0 %578
        %580 = vrot.lane.b32.xlu0 %v573, 79
        %v581 = vpop.permute.xlu0 %580
        %582 = vrot.lane.b32.xlu0 %v574, 79
        %v583 = vpop.permute.xlu0 %582
        %vm584 = vcmask 646144
        %v585 = vsel %vm584, %v579, %v581
        %v586 = vsel %vm584, %v581, %v583
        %589 = vst [vmem:[#allocation2 + $0x80] sm:$0xff] %v585
        %590 = vst [vmem:[#allocation2 + $0x88] sm:$0xff] %v586
        %591 = vst [vmem:[#allocation1] ss:$2 sm:$0xff] %v190
        %s592 = scalar_lea.vmem [#allocation1], 16
        %593 = vst [vmem:[%s592] ss:$2 sm:$0xff] %v191
        %v594 = vld.sshfl [vmem:[#allocation1] sm:$0xff pattern:$0x75316420]
        %v595 = vld.sshfl [vmem:[#allocation1 + $0x8] sm:$0xff pattern:$0x75316420]
        %v596 = vld.sshfl [vmem:[#allocation1 + $0x10] sm:$0xff pattern:$0x75316420]
        %s600 = scalar_lea.vmem [#allocation1], 1
        %601 = vst [vmem:[%s600] ss:$2 sm:$0xff] %v190
        %s602 = scalar_lea.vmem [#allocation1], 17
        %603 = vst [vmem:[%s602] ss:$2 sm:$0xff] %v191
        %v604 = vld.sshfl [vmem:[#allocation1] sm:$0xff pattern:$0x75316420]
        %v605 = vld.sshfl [vmem:[#allocation1 + $0x8] sm:$0xff pattern:$0x75316420]
        %v606 = vld.sshfl [vmem:[#allocation1 + $0x10] sm:$0xff pattern:$0x75316420]
        %607 = vrot.lane.b32.xlu0 %v604, 127
        %v608 = vpop.permute.xlu0 %607
        %609 = vrot.lane.b32.xlu0 %v605, 127
        %v610 = vpop.permute.xlu0 %609
        %611 = vrot.lane.b32.xlu0 %v606, 127
        %v612 = vpop.permute.xlu0 %611
        %v613 = vsel %vm212, %v608, %v610
        %v614 = vsel %vm212, %v610, %v612
        %v618 = vsel %vm217, %v594, %v613
        %v619 = vsel %vm217, %v595, %v614
        %v620 = vsel %vm217, %v596, %v612
        %624 = vrot.lane.b32.xlu0 %v618, 77
        %v625 = vpop.permute.xlu0 %624
        %626 = vrot.lane.b32.xlu0 %v619, 77
        %v627 = vpop.permute.xlu0 %626
        %628 = vrot.lane.b32.xlu0 %v620, 77
        %v629 = vpop.permute.xlu0 %628
        %vm630 = vcmask 629760
        %v631 = vsel %vm630, %v625, %v627
        %v632 = vsel %vm630, %v627, %v629
        %635 = vst [vmem:[#allocation2 + $0x90] sm:$0xff] %v631
        %636 = vst [vmem:[#allocation2 + $0x98] sm:$0xff] %v632
        %637 = vst [vmem:[#allocation1] ss:$2 sm:$0xff] %v190
        %s638 = scalar_lea.vmem [#allocation1], 16
        %639 = vst [vmem:[%s638] ss:$2 sm:$0xff] %v191
        %v640 = vld.sshfl [vmem:[#allocation1] sm:$0xff pattern:$0x75316420]
        %v641 = vld.sshfl [vmem:[#allocation1 + $0x8] sm:$0xff pattern:$0x75316420]
        %v642 = vld.sshfl [vmem:[#allocation1 + $0x10] sm:$0xff pattern:$0x75316420]
        %s646 = scalar_lea.vmem [#allocation1], 1
        %647 = vst [vmem:[%s646] ss:$2 sm:$0xff] %v190
        %s648 = scalar_lea.vmem [#allocation1], 17
        %649 = vst [vmem:[%s648] ss:$2 sm:$0xff] %v191
        %v650 = vld.sshfl [vmem:[#allocation1] sm:$0xff pattern:$0x75316420]
        %v651 = vld.sshfl [vmem:[#allocation1 + $0x8] sm:$0xff pattern:$0x75316420]
        %v652 = vld.sshfl [vmem:[#allocation1 + $0x10] sm:$0xff pattern:$0x75316420]
        %653 = vrot.lane.b32.xlu0 %v650, 127
        %v654 = vpop.permute.xlu0 %653
        %655 = vrot.lane.b32.xlu0 %v651, 127
        %v656 = vpop.permute.xlu0 %655
        %657 = vrot.lane.b32.xlu0 %v652, 127
        %v658 = vpop.permute.xlu0 %657
        %v659 = vsel %vm212, %v654, %v656
        %v660 = vsel %vm212, %v656, %v658
        %v664 = vsel %vm217, %v640, %v659
        %v665 = vsel %vm217, %v641, %v660
        %v666 = vsel %vm217, %v642, %v658
        %670 = vrot.lane.b32.xlu0 %v664, 64
        %v671 = vpop.permute.xlu0 %670
        %672 = vrot.lane.b32.xlu0 %v665, 64
        %v673 = vpop.permute.xlu0 %672
        %674 = vrot.lane.b32.xlu0 %v666, 64
        %v675 = vpop.permute.xlu0 %674
        %vm676 = vcmask 523264
        %v677 = vsel %vm676, %v671, %v673
        %v678 = vsel %vm676, %v673, %v675
        %681 = vst [vmem:[#allocation2 + $0xa0] sm:$0xff] %v677
        %682 = vst [vmem:[#allocation2 + $0xa8] sm:$0xff] %v678
        %683 = vst [vmem:[#allocation1] ss:$2 sm:$0xff] %v190
        %s684 = scalar_lea.vmem [#allocation1], 16
        %685 = vst [vmem:[%s684] ss:$2 sm:$0xff] %v191
        %v686 = vld.sshfl [vmem:[#allocation1] sm:$0xff pattern:$0x75316420]
        %v687 = vld.sshfl [vmem:[#allocation1 + $0x8] sm:$0xff pattern:$0x75316420]
        %v688 = vld.sshfl [vmem:[#allocation1 + $0x10] sm:$0xff pattern:$0x75316420]
        %s692 = scalar_lea.vmem [#allocation1], 1
        %693 = vst [vmem:[%s692] ss:$2 sm:$0xff] %v190
        %s694 = scalar_lea.vmem [#allocation1], 17
        %695 = vst [vmem:[%s694] ss:$2 sm:$0xff] %v191
        %v696 = vld.sshfl [vmem:[#allocation1] sm:$0xff pattern:$0x75316420]
        %v697 = vld.sshfl [vmem:[#allocation1 + $0x8] sm:$0xff pattern:$0x75316420]
        %v698 = vld.sshfl [vmem:[#allocation1 + $0x10] sm:$0xff pattern:$0x75316420]
        %699 = vrot.lane.b32.xlu0 %v696, 127
        %v700 = vpop.permute.xlu0 %699
        %701 = vrot.lane.b32.xlu0 %v697, 127
        %v702 = vpop.permute.xlu0 %701
        %703 = vrot.lane.b32.xlu0 %v698, 127
        %v704 = vpop.permute.xlu0 %703
        %v705 = vsel %vm212, %v700, %v702
        %v706 = vsel %vm212, %v702, %v704
        %v710 = vsel %vm217, %v686, %v705
        %v711 = vsel %vm217, %v687, %v706
        %v712 = vsel %vm217, %v688, %v704
        %716 = vrot.lane.b32.xlu0 %v710, 62
        %v717 = vpop.permute.xlu0 %716
        %718 = vrot.lane.b32.xlu0 %v711, 62
        %v719 = vpop.permute.xlu0 %718
        %720 = vrot.lane.b32.xlu0 %v712, 62
        %v721 = vpop.permute.xlu0 %720
        %vm722 = vcmask 506880
        %v723 = vsel %vm722, %v717, %v719
        %v724 = vsel %vm722, %v719, %v721
        %727 = vst [vmem:[#allocation2 + $0xb0] sm:$0xff] %v723
        %728 = vst [vmem:[#allocation2 + $0xb8] sm:$0xff] %v724
        %729 = vst [vmem:[#allocation1] ss:$2 sm:$0xff] %v190
        %s730 = scalar_lea.vmem [#allocation1], 16
        %731 = vst [vmem:[%s730] ss:$2 sm:$0xff] %v191
        %v732 = vld.sshfl [vmem:[#allocation1] sm:$0xff pattern:$0x75316420]
        %v733 = vld.sshfl [vmem:[#allocation1 + $0x8] sm:$0xff pattern:$0x75316420]
        %v734 = vld.sshfl [vmem:[#allocation1 + $0x10] sm:$0xff pattern:$0x75316420]
        %735 = vrot.lane.b32.xlu0 %v732, 60
        %v736 = vpop.permute.xlu0 %735
        %737 = vrot.lane.b32.xlu0 %v733, 60
        %v738 = vpop.permute.xlu0 %737
        %739 = vrot.lane.b32.xlu0 %v734, 60
        %v740 = vpop.permute.xlu0 %739
        %vm741 = vcmask 490496
        %v742 = vsel %vm741, %v736, %v738
        %v743 = vsel %vm741, %v738, %v740
        %746 = vst [vmem:[#allocation2 + $0xc0] sm:$0xf] %v742
        %747 = vst [vmem:[#allocation2 + $0xc8] sm:$0xf] %v743
        %v748 = vld [vmem:[#allocation6] sm:$0xff]
        %v749 = vld [vmem:[#allocation2] sm:$0xff]
        %v750 = vld [vmem:[#allocation2 + $0x8] sm:$0xff]
        %v751 = vld [vmem:[#allocation2 + $0x10] sm:$0xff]
        %v752 = vld [vmem:[#allocation2 + $0x18] sm:$0xff]
        %v753 = vld [vmem:[#allocation2 + $0x20] sm:$0xff]
        %v754 = vld [vmem:[#allocation2 + $0x28] sm:$0xff]
        %v755 = vld [vmem:[#allocation2 + $0x30] sm:$0xff]
        %v756 = vld [vmem:[#allocation2 + $0x38] sm:$0xff]
        %v757 = vld [vmem:[#allocation2 + $0x40] sm:$0xff]
        %v758 = vld [vmem:[#allocation2 + $0x48] sm:$0xff]
        %v759 = vld [vmem:[#allocation2 + $0x50] sm:$0xff]
        %v760 = vld [vmem:[#allocation2 + $0x58] sm:$0xff]
        %v761 = vld [vmem:[#allocation2 + $0x60] sm:$0xff]
        %v762 = vld [vmem:[#allocation2 + $0x68] sm:$0xff]
        %v763 = vld [vmem:[#allocation2 + $0x70] sm:$0xff]
        %v764 = vld [vmem:[#allocation2 + $0x78] sm:$0xff]
        %v765 = vld [vmem:[#allocation2 + $0x80] sm:$0xff]
        %v766 = vld [vmem:[#allocation2 + $0x88] sm:$0xff]
        %v767 = vld [vmem:[#allocation2 + $0x90] sm:$0xff]
        %v768 = vld [vmem:[#allocation2 + $0x98] sm:$0xff]
        %v769 = vld [vmem:[#allocation2 + $0xa0] sm:$0xff]
        %v770 = vld [vmem:[#allocation2 + $0xa8] sm:$0xff]
        %v771 = vld [vmem:[#allocation2 + $0xb0] sm:$0xff]
        %v772 = vld [vmem:[#allocation2 + $0xb8] sm:$0xff]
        %v773 = vld [vmem:[#allocation2 + $0xc0] sm:$0xff]
        %v774 = vld [vmem:[#allocation2 + $0xc8] sm:$0xff]
        %v775 = vld [vmem:[#allocation2 + $0xd0] sm:$0xff]
        %v776 = vld [vmem:[#allocation2 + $0xd8] sm:$0xff]
        %v777 = vld [vmem:[#allocation2 + $0xe0] sm:$0xff]
        %v778 = vld [vmem:[#allocation2 + $0xe8] sm:$0xff]
        %v779 = vld [vmem:[#allocation2 + $0xf0] sm:$0xff]
        %v780 = vld [vmem:[#allocation2 + $0xf8] sm:$0xff]
        %781 = vmatpush.msra.mxu0 %v779
        %782 = vmatpush.msra.mxu0 %v777
        %783 = vmatpush.msra.mxu0 %v775
        %784 = vmatpush.msra.mxu0 %v773
        %785 = vmatpush.msra.mxu0 %v771
        %786 = vmatpush.msra.mxu0 %v769
        %787 = vmatpush.msra.mxu0 %v767
        %788 = vmatpush.msra.mxu0 %v765
        %789 = vmatpush.msra.mxu0 %v763
        %790 = vmatpush.msra.mxu0 %v761
        %791 = vmatpush.msra.mxu0 %v759
        %792 = vmatpush.msra.mxu0 %v757
        %793 = vmatpush.msra.mxu0 %v755
        %794 = vmatpush.msra.mxu0 %v753
        %795 = vmatpush.msra.mxu0 %v751
        %796 = vmatpush.msra.mxu0 %v749
        %797 = vmatmul.f32.gmra.mxu0 %v748
        %v798 = vpop.f32.mrf.mxu0
        %v799 = vadd.f32 0.0, %v798
        %800 = vdwg.mxu0
        %801 = vmatpush.msra.mxu0 %v780
        %802 = vmatpush.msra.mxu0 %v778
        %803 = vmatpush.msra.mxu0 %v776
        %804 = vmatpush.msra.mxu0 %v774
        %805 = vmatpush.msra.mxu0 %v772
        %806 = vmatpush.msra.mxu0 %v770
        %807 = vmatpush.msra.mxu0 %v768
        %808 = vmatpush.msra.mxu0 %v766
        %809 = vmatpush.msra.mxu0 %v764
        %810 = vmatpush.msra.mxu0 %v762
        %811 = vmatpush.msra.mxu0 %v760
        %812 = vmatpush.msra.mxu0 %v758
        %813 = vmatpush.msra.mxu0 %v756
        %814 = vmatpush.msra.mxu0 %v754
        %815 = vmatpush.msra.mxu0 %v752
        %816 = vmatpush.msra.mxu0 %v750
        %817 = vmatmul.f32.gmra.mxu0 %v748
        %v818 = vpop.f32.mrf.mxu0
        %v819 = vadd.f32 0.0, %v818
        %820 = vdwg.mxu0
        %821 = vst [vmem:[%s176] sm:$0xff] %v799
        %822 = vst [vmem:[%s176 + $0x8] sm:$0xff] %v819
        %s823 = sand.u32 %s75, 1
        %s824 = scalar_lea.sflag [#allocation5], %s823
        %s825 = sand.u32 %s75, 1
        %s826 = smul.addr %s825, 16
        %s827 = scalar_lea.vmem [#allocation8], %s826
        // Predicated region
        $region41: #{tpu_custom_call.1} parent=27 // pred_check
          %p828 = pneg %p85
        $region42: #{tpu_custom_call.1} parent=27 // pred_check_branch
          %830 = sbr.rel (%p828) target = $region44
        $region43: #{tpu_custom_call.1} parent=27 // pred_region
          %s831 = smul.u32 2, %s20
          %833 = vsyncadd %s824, 0
          %s834 = smul.addr %s831, 8
          %s835 = scalar_lea.hbm %s2, %s834
          %s837 = sshll.u32 %s827, 4
          %s838 = int_to_ptr.vmem [resolvable:$true] %s837
          %s839 = sshll.u32 %s835, 4
          %s840 = int_to_ptr.hbm [resolvable:$true] %s839
          %842 = dma.vmem_to_hbm [thread:$0]  %s838, 256, %s840, %s824
        $region44: #{tpu_custom_call.1} parent=27 // pred_fallthru
          _
      $region28: #{tpu_custom_call.1} parent=5 // pred_fallthru
        _
      %p843 = scmp.le.s32.totalorder 2, %s15
      // Predicated region
      $region45: #{tpu_custom_call.1} parent=5 // pred_check
        %p844 = pneg %p843
      $region46: #{tpu_custom_call.1} parent=5 // pred_check_branch
        %846 = sbr.rel (%p844) target = $region48
      $region47: #{tpu_custom_call.1} parent=5 // pred_region
        %s847 = ssub.s32 %s15, 2
        // Predicated region
        $region49: #{tpu_custom_call.1} parent=47 // pred_check
          %p848 = pneg %p91
        $region50: #{tpu_custom_call.1} parent=47 // pred_check_branch
          %850 = sbr.rel (%p848) target = $region52
        $region51: #{tpu_custom_call.1} parent=47 // pred_region
          %s851 = sand.u32 %s76, 1
          %s852 = scalar_lea.sflag [#allocation5], %s851
          %s853 = sand.u32 %s76, 1
          %s854 = smul.addr %s853, 16
          %s855 = scalar_lea.vmem [#allocation8], %s854
          %857 = dma.done %s852, 256
        $region52: #{tpu_custom_call.1} parent=47 // pred_fallthru
          _
      $region48: #{tpu_custom_call.1} parent=5 // pred_fallthru
        _
    $region6: #{tpu_custom_call.1} parent=1 // loop_footer
      %s19 = sadd.s32 1, %s15
    $region7: #{tpu_custom_call.1} parent=1 // loop_footer_branch
      %14 = sbr.rel target = $region3
    $region8: #{tpu_custom_call.1} parent=1 // loop_exit
      _
    %858 = vsyncpa [#allocation4], 1
    %s859 = scalar_lea.sflag [#allocation4], 1
    %860 = vsyncpa %s859, 1
    %861 = vsyncpa [#allocation7], 1
    %862 = vsyncpa [#allocation5], 1
    %s863 = scalar_lea.sflag [#allocation5], 1
    %864 = vsyncpa %s863, 1

</llo_original>
